<compile_context>
chip_gen: v7x
topology: tpu7x:2x2x1
jax: 0.10.0
libtpu: 0.0.40
codegen_flags: <defaults>
</compile_context>

<pallas_src>
import functools

import jax
import jax.numpy as jnp
from jax.experimental import pallas as pl
from jax.experimental.pallas import tpu as pltpu

LANES = 128
ACC_ROWS = 8                                # (8, 128) f32 accumulator = one vreg
BLOCK_ROWS = 1024                           # up to 1024 x 128 per grid step
N_SLICES_MAX = 8                            # leading "parallel" grid axis (v7x megacore)
SMALL_INPUT_THRESHOLD = ACC_ROWS * LANES    # below one vreg, plain XLA is faster


def _partial_sum_kernel(x_ref, o_ref, *, n_rows, block_rows, tiles_per_slice):
    """Accumulate per-slice partial sums into a vreg-shaped (8, 128) output block.

    Grid = (n_slices [parallel], tiles_per_slice [arbitrary/reduction]).
    The output block index depends only on the slice index, so it stays
    resident in VMEM across the inner reduction axis (accumulator pattern).
    """
    s = pl.program_id(0)   # parallel slice
    i = pl.program_id(1)   # sequential reduction step within the slice

    @pl.when(i == 0)
    def _():
        o_ref[...] = jnp.zeros_like(o_ref)

    # Logical (unclamped) block index -> first row this step is meant to cover.
    # The input index_map clamps duplicated / out-of-range tail blocks onto the
    # last valid block; the row mask below zeroes their contribution and also
    # zeroes the unspecified padding rows of the final partial block.
    row0 = (s * tiles_per_slice + i) * block_rows
    rows_left = n_rows - row0                       # may be <= 0 for tail blocks

    x = x_ref[...].astype(jnp.float32)              # (block_rows, 128)
    row_ids = jax.lax.broadcasted_iota(jnp.int32, x.shape, 0)
    x = jnp.where(row_ids < rows_left, x, 0.0)

    # Fold (block_rows, 128) -> (8, 128) with plain VPU vreg adds; the single
    # expensive cross-lane/sublane reduce happens once, in the wrapper.
    o_ref[...] += jnp.sum(
        x.reshape(block_rows // ACC_ROWS, ACC_ROWS, LANES), axis=0
    )


def generator_adversarial_loss_wgan_gp(pred_fake):
    """JAX/Pallas equivalent of GeneratorAdversarialLossWGAN_GP.forward.

    Returns a float32 scalar equal to -mean(pred_fake).
    """
    n_elems = pred_fake.size

    # Tiny inputs: kernel launch / pipeline startup dwarfs the reduction.
    if n_elems < SMALL_INPUT_THRESHOLD:
        return -jnp.mean(pred_fake.astype(jnp.float32))

    # Keep the native dtype on the wire (the f32 cast happens per-tile in the
    # kernel), and avoid any full-array pad: reshape of a contiguous flat
    # array is free.
    flat = jnp.reshape(pred_fake, (-1,))
    rem = n_elems % LANES
    if rem:
        # Uncommon ragged-lane case: pad only to the next lane multiple
        # (<= 127 zeros; zeros do not change the sum).
        flat = jnp.pad(flat, (0, LANES - rem))
    n_rows = flat.size // LANES
    x2d = jnp.reshape(flat, (n_rows, LANES))

    block_rows = min(BLOCK_ROWS, pl.cdiv(n_rows, ACC_ROWS) * ACC_ROWS)
    n_blocks = pl.cdiv(n_rows, block_rows)
    n_slices = min(N_SLICES_MAX, n_blocks)
    tiles_per_slice = pl.cdiv(n_blocks, n_slices)

    def in_index_map(s, i):
        b = s * tiles_per_slice + i
        # Clamp so the generated DMA never targets a fully out-of-range block;
        # duplicated reads are zeroed by the in-kernel row mask.
        return (jnp.minimum(b, n_blocks - 1), 0)

    kernel = functools.partial(
        _partial_sum_kernel,
        n_rows=n_rows,
        block_rows=block_rows,
        tiles_per_slice=tiles_per_slice,
    )

    partials = pl.pallas_call(
        kernel,
        out_shape=jax.ShapeDtypeStruct((n_slices * ACC_ROWS, LANES), jnp.float32),
        grid_spec=pltpu.PrefetchScalarGridSpec(
            num_scalar_prefetch=0,
            grid=(n_slices, tiles_per_slice),
            in_specs=[pl.BlockSpec((block_rows, LANES), in_index_map)],
            out_specs=pl.BlockSpec((ACC_ROWS, LANES), lambda s, i: (s, 0)),
        ),
        compiler_params=pltpu.CompilerParams(
            dimension_semantics=("parallel", "arbitrary"),
        ),
    )(x2d)

    # Single final cross-lane reduce + scale + negate on a tiny (n_slices*8, 128) array.
    return -(jnp.sum(partials) / jnp.float32(n_elems))


if __name__ == "__main__":
    key = jax.random.PRNGKey(0)
    k1, k2 = jax.random.split(key)

    # Small demo input from the module spec: NCHW discriminator scores.
    pred_fake = jax.random.normal(k1, (2, 4, 16, 16), dtype=jnp.float32)
    loss = generator_adversarial_loss_wgan_gp(pred_fake)
    jax.block_until_ready(loss)
    ref = -jnp.mean(pred_fake)
    assert jnp.allclose(loss, ref, atol=1e-6, rtol=1e-6), (loss, ref)

    # Larger bf16 input: exercises native-dtype wire, the multi-block grid with
    # a parallel slice axis, and ragged-tail masking (1360 rows, block=1024).
    big = jax.random.normal(k2, (2, 5, 136, 128), dtype=jnp.float32).astype(jnp.bfloat16)
    loss_big = generator_adversarial_loss_wgan_gp(big)
    jax.block_until_ready(loss_big)
    ref_big = -jnp.mean(big.astype(jnp.float32))
    assert jnp.allclose(loss_big, ref_big, atol=1e-5, rtol=1e-5), (loss_big, ref_big)

    print("KERNEL_OK")
</pallas_src>

<mosaic_0001>
module attributes {stable_mosaic.version = 11 : i64} {
  func.func @_partial_sum_kernel(%arg0: i32, %arg1: i32, %arg2: memref<16x128xf32, #tpu.memory_space<vmem>>, %arg3: memref<8x128xf32, #tpu.memory_space<vmem>>) attributes {dimension_semantics = [#tpu.dimension_semantics<parallel>, #tpu.dimension_semantics<arbitrary>], iteration_bounds = array<i64: 1, 1>, scalar_prefetch = 0 : i64, scratch_operands = 0 : i64, tpu.core_type = #tpu.core_type<tc>, window_params = [{transform_indices = @transform_0, window_bounds = array<i64: 16, 128>}, {transform_indices = @transform_1, window_bounds = array<i64: 8, 128>}]} {
    %c0_i32 = arith.constant 0 : i32
    %0 = arith.cmpi eq, %arg1, %c0_i32 : i32
    %1 = arith.extui %0 : i1 to i32
    %c0_i32_0 = arith.constant 0 : i32
    %2 = arith.cmpi ne, %1, %c0_i32_0 : i32
    scf.if %2 {
      %cst_8 = arith.constant 0.000000e+00 : f32
      %18 = vector.broadcast %cst_8 : f32 to vector<8x128xf32>
      %c0_9 = arith.constant 0 : index
      %c0_10 = arith.constant 0 : index
      %19 = vector.load %arg3[%c0_9, %c0_10] : memref<8x128xf32, #tpu.memory_space<vmem>>, vector<8x128xf32>
      tpu.vector_store %arg3[%c0_9, %c0_10], %18 {strides = array<i32>} : memref<8x128xf32, #tpu.memory_space<vmem>>, vector<8x128xf32>,
    } else {
    }
    %c1_i32 = arith.constant 1 : i32
    %3 = arith.muli %arg0, %c1_i32 : i32
    %4 = arith.addi %3, %arg1 : i32
    %c16_i32 = arith.constant 16 : i32
    %5 = arith.muli %4, %c16_i32 : i32
    %c16_i32_1 = arith.constant 16 : i32
    %6 = arith.subi %c16_i32_1, %5 : i32
    %c0 = arith.constant 0 : index
    %c0_2 = arith.constant 0 : index
    %7 = vector.load %arg2[%c0, %c0_2] : memref<16x128xf32, #tpu.memory_space<vmem>>, vector<16x128xf32>
    %8 = tpu.iota {dimensions = array<i32: 0>} : vector<16x128xi32>
    %9 = vector.broadcast %6 : i32 to vector<16x128xi32>
    %10 = arith.cmpi slt, %8, %9 : vector<16x128xi32>
    %cst = arith.constant 0.000000e+00 : f32
    %11 = vector.broadcast %cst : f32 to vector<16x128xf32>
    %12 = arith.select %10, %7, %11 : vector<16x128xi1>, vector<16x128xf32>
    %c0_3 = arith.constant 0 : index
    %c0_4 = arith.constant 0 : index
    %13 = vector.load %arg3[%c0_3, %c0_4] : memref<8x128xf32, #tpu.memory_space<vmem>>, vector<8x128xf32>
    %14 = vector.shape_cast %12 : vector<16x128xf32> to vector<2x8x128xf32>
    %cst_5 = arith.constant dense<0.000000e+00> : vector<8x128xf32>
    %15 = vector.multi_reduction <add>, %14, %cst_5 [0] : vector<2x8x128xf32> to vector<8x128xf32>
    %16 = arith.addf %13, %15 : vector<8x128xf32>
    %c0_6 = arith.constant 0 : index
    %c0_7 = arith.constant 0 : index
    %17 = vector.load %arg3[%c0_6, %c0_7] : memref<8x128xf32, #tpu.memory_space<vmem>>, vector<8x128xf32>
    tpu.vector_store %arg3[%c0_6, %c0_7], %16 {strides = array<i32>} : memref<8x128xf32, #tpu.memory_space<vmem>>, vector<8x128xf32>,
    return
  }
  func.func @transform_0(%arg0: i32, %arg1: i32) -> (i32, i32) {
    %c1_i32 = arith.constant 1 : i32
    %0 = arith.muli %arg0, %c1_i32 : i32
    %1 = arith.addi %0, %arg1 : i32
    %c0_i32 = arith.constant 0 : i32
    %2 = arith.minsi %1, %c0_i32 : i32
    %c0_i32_0 = arith.constant 0 : i32
    %c0_i32_1 = arith.constant 0 : i32
    return %2, %c0_i32_0 : i32, i32
  }
  func.func @transform_1(%arg0: i32, %arg1: i32) -> (i32, i32) {
    %c0_i32 = arith.constant 0 : i32
    %c0_i32_0 = arith.constant 0 : i32
    return %arg0, %c0_i32 : i32, i32
  }
}

</mosaic_0001>

<llo_original>
// kernel: tpu_custom_call.1
$region0: #{tpu_custom_call.1}
  #allocation0 [shape = 'u32[]', space=smem, size = 0x4, offset = 0x4, fixed_abs, tag = 'smem constant byte address 0x4 - core index']
  #allocation1 [shape = 'u32[144,128]{1,0:T(1,128)}', space=vmem, size = 0x12000, scoped, tag = 'internal scratch']
  %s0 = inlined_call_operand.hbm [shape: f32[16,128], index: 0, kind: input, shape index: {}]
  %s1 = inlined_call_operand.hbm [shape: f32[8,128], index: 1, kind: output, shape index: {}]
  %s2 = sld [smem:[#allocation0]]
  $region22: #{tpu_custom_call.1} parent=0
    _
  %s4 = ssub.s32 1, %s2
  %s5 = scalar_select 0, %s4, %s2
  $region1: #{tpu_custom_call.1} parent=0
    #allocation2 [shape = 'u8[8192]{0}', space=vmem, size = 0x2000, scoped, tag = 'input window, operand 0, single buffered']
    #allocation3 [shape = 's32[1]{0}', space=sflag, size = 0x4, scoped, tag = 'scoped memory for tpu_custom_call.1']
    #allocation4 [shape = 's32[1]{0}', space=sflag, size = 0x4, scoped, tag = 'scoped memory for tpu_custom_call.1']
    #allocation5 [shape = 'u8[4096]{0}', space=vmem, size = 0x1000, scoped, tag = 'output window, operand 0, single buffered']
    %6 = vsyncpa [#allocation3], 0
    %7 = vsyncpa [#allocation4], 0
    // Predicated region
    $region2: #{tpu_custom_call.1} parent=1 // pred_check
      _
    $region3: #{tpu_custom_call.1} parent=1 // pred_check_branch
      %9 = sbr.rel (0) target = $region5
    $region4: #{tpu_custom_call.1} parent=1 // pred_region
      %s10 = sadd.s32 0, 0
      %p11 = scmp.lt.s32.totalorder %s10, 0
      %s12 = scalar_select %p11, %s10, 0
      %s13 = smul.u32 2, %s12
      %s15 = ssub.s32 256, 256
      %16 = vsyncadd [#allocation3], %s15
      %s17 = smul.addr %s13, 128
      %s18 = scalar_lea.hbm %s0, %s17
      %s19 = sshll.u32 [#allocation2], 4
      %s20 = int_to_ptr.vmem [resolvable:$true] %s19
      %25 = dma.hbm_to_vmem [thread:$0]  %s18, 256, %s20, [#allocation3], 128, 128, 8
    $region5: #{tpu_custom_call.1} parent=1 // pred_fallthru
      _
    // Predicated region
    $region6: #{tpu_custom_call.1} parent=1 // pred_check
      _
    $region7: #{tpu_custom_call.1} parent=1 // pred_check_branch
      %27 = sbr.rel (0) target = $region9
    $region8: #{tpu_custom_call.1} parent=1 // pred_region
      %28 = dma.done [#allocation3], 256
    $region9: #{tpu_custom_call.1} parent=1 // pred_fallthru
      _
    %s29 = sadd.s32 0, 0
    %p30 = scmp.lt.s32.totalorder %s29, 0
    %s31 = scalar_select %p30, %s29, 0
    %s32 = smul.u32 2, %s31
    %p33 = scmp.eq.s32.totalorder 0, 0
    // Predicated region
    $region10: #{tpu_custom_call.1} parent=1 // pred_check
      %p34 = pneg %p33
    $region11: #{tpu_custom_call.1} parent=1 // pred_check_branch
      %36 = sbr.rel (%p34) target = $region13
    $region12: #{tpu_custom_call.1} parent=1 // pred_region
      %37 = vst [vmem:[#allocation5] sm:$0xff] 0.0
    $region13: #{tpu_custom_call.1} parent=1 // pred_fallthru
      _
    %s38 = sadd.s32 0, 0
    %s39 = smul.u32 %s38, 16
    %s40 = ssub.s32 16, %s39
    %v41 = vld [vmem:[#allocation2] sm:$0xff]
    %v42 = vld [vmem:[#allocation2 + $0x8] sm:$0xff]
    %v43 = vlaneseq
    %v44 = vshrl.u32 %v43, 7
    %v45 = vadd.s32 %v44, 8
    %v46 = vstv %s40
    %vm47 = vcmp.lt.s32.totalorder %v44, %v46
    %vm48 = vcmp.lt.s32.totalorder %v45, %v46
    %v49 = vsel %vm47, %v41, 0.0
    %v50 = vsel %vm48, %v42, 0.0
    %v51 = vld [vmem:[#allocation5] sm:$0xff]
    %v52 = vadd.f32 %v49, %v50
    %v53 = vadd.f32 %v51, %v52
    %54 = vst [vmem:[#allocation5] sm:$0xff] %v53
    // Predicated region
    $region14: #{tpu_custom_call.1} parent=1 // pred_check
      _
    $region15: #{tpu_custom_call.1} parent=1 // pred_check_branch
      %56 = sbr.rel (0) target = $region17
    $region16: #{tpu_custom_call.1} parent=1 // pred_region
      %s58 = ssub.s32 128, 128
      %59 = vsyncadd [#allocation4], %s58
      %s61 = sshll.u32 [#allocation5], 4
      %s62 = int_to_ptr.vmem [resolvable:$true] %s61
      %64 = dma.vmem_to_hbm [thread:$0]  %s62, 128, %s1, [#allocation4]
    $region17: #{tpu_custom_call.1} parent=1 // pred_fallthru
      _
    // Predicated region
    $region18: #{tpu_custom_call.1} parent=1 // pred_check
      _
    $region19: #{tpu_custom_call.1} parent=1 // pred_check_branch
      %66 = sbr.rel (0) target = $region21
    $region20: #{tpu_custom_call.1} parent=1 // pred_region
      %67 = dma.done [#allocation4], 128
    $region21: #{tpu_custom_call.1} parent=1 // pred_fallthru
      _
    %68 = vsyncpa [#allocation3], 1
    %69 = vsyncpa [#allocation4], 1

</llo_original>
